<compile_context>
chip_gen: v7x
topology: tpu7x:2x2x1
jax: 0.10.0
libtpu: 0.0.40
codegen_flags: <defaults>
</compile_context>

<pallas_src>
import jax
import jax.numpy as jnp
from jax.experimental import pallas as pl
from jax.experimental.pallas import tpu as pltpu


def beale_kernel(theta_ref, out_ref):
    # theta_ref: SMEM ref, shape (2,), float32
    # out_ref:   SMEM ref, shape (1,), float32
    x = theta_ref[0]
    y = theta_ref[1]
    xy = x * y            # x*y
    xyy = xy * y          # x*y^2  (reused for t2 and t3)
    t1 = 1.5 - x + xy     # 1.5   - x + x*y
    t2 = 2.25 - x + xyy   # 2.25  - x + x*y^2
    t3 = 2.625 - x + xyy * y  # 2.625 - x + x*y^3
    out_ref[0] = t1 * t1 + t2 * t2 + t3 * t3


def beale_forward(theta: jax.Array) -> jax.Array:
    """theta: (2,) float32 -> scalar float32 (Beale function value).

    Standalone Pallas form; cost is entirely pallas_call dispatch.  For
    production use inside a larger jit (or when gradients are needed), inline
    `beale_reference` instead — it fuses for free and supports jax.grad.
    """
    out = pl.pallas_call(
        beale_kernel,
        out_shape=jax.ShapeDtypeStruct((1,), jnp.float32),
        in_specs=[pl.BlockSpec(memory_space=pltpu.SMEM)],
        out_specs=pl.BlockSpec(memory_space=pltpu.SMEM),
    )(theta)
    return out[0]


def beale_reference(theta: jax.Array) -> jax.Array:
    # Pure-jnp path: preferred when the value can be fused into surrounding
    # JAX code or when jax.grad(theta) is required.
    x, y = theta[0], theta[1]
    return ((1.5 - x + x * y) ** 2
            + (2.25 - x + x * y ** 2) ** 2
            + (2.625 - x + x * y ** 3) ** 2)


if __name__ == "__main__":
    key = jax.random.PRNGKey(0)
    # Deterministic stand-in for np_rng.normal(size=2)
    theta = jax.random.normal(key, (2,), dtype=jnp.float32)

    result = jax.jit(beale_forward)(theta)
    jax.block_until_ready(result)

    ref = beale_reference(theta)
    assert jnp.allclose(result, ref, rtol=1e-5, atol=1e-5), (result, ref)

    print("KERNEL_OK")
</pallas_src>

<mosaic_0001>
module attributes {stable_mosaic.version = 11 : i64} {
  func.func @beale_kernel(%arg0: memref<2xf32, #tpu.memory_space<smem>>, %arg1: memref<1xf32, #tpu.memory_space<smem>>) attributes {dimension_semantics = [], scalar_prefetch = 0 : i64, scratch_operands = 0 : i64, tpu.core_type = #tpu.core_type<tc>} {
    %c0 = arith.constant 0 : index
    %0 = memref.load %arg0[%c0] : memref<2xf32, #tpu.memory_space<smem>>
    %c1 = arith.constant 1 : index
    %1 = memref.load %arg0[%c1] : memref<2xf32, #tpu.memory_space<smem>>
    %2 = arith.mulf %0, %1 : f32
    %3 = arith.mulf %2, %1 : f32
    %cst = arith.constant 1.500000e+00 : f32
    %4 = arith.subf %cst, %0 : f32
    %5 = arith.addf %4, %2 : f32
    %cst_0 = arith.constant 2.250000e+00 : f32
    %6 = arith.subf %cst_0, %0 : f32
    %7 = arith.addf %6, %3 : f32
    %cst_1 = arith.constant 2.625000e+00 : f32
    %8 = arith.subf %cst_1, %0 : f32
    %9 = arith.mulf %3, %1 : f32
    %10 = arith.addf %8, %9 : f32
    %11 = arith.mulf %5, %5 : f32
    %12 = arith.mulf %7, %7 : f32
    %13 = arith.addf %11, %12 : f32
    %14 = arith.mulf %10, %10 : f32
    %15 = arith.addf %13, %14 : f32
    %c0_2 = arith.constant 0 : index
    %16 = memref.load %arg1[%c0_2] : memref<1xf32, #tpu.memory_space<smem>>
    memref.store %15, %arg1[%c0_2] : memref<1xf32, #tpu.memory_space<smem>>
    return
  }
}

</mosaic_0001>

<llo_original>
// kernel: beale_forward.1
$region0: #{beale_forward.1}
  #allocation0 [shape = 'u32[]', space=smem, size = 0x4, offset = 0x4, fixed_abs, tag = 'smem constant byte address 0x4 - core index']
  #allocation1 [shape = 'u32[144,128]{1,0:T(1,128)}', space=vmem, size = 0x12000, scoped, tag = 'internal scratch']
  %s0 = inlined_call_operand.hbm [shape: f32[2], index: 0, kind: input, shape index: {}]
  %s1 = inlined_call_operand.hbm [shape: f32[1], index: 1, kind: output, shape index: {}]
  %s2 = sld [smem:[#allocation0]]
  $region18: #{beale_forward.1} parent=0
    _
  %s4 = ssub.s32 1, %s2
  %s5 = scalar_select 0, %s4, %s2
  $region1: #{beale_forward.1} parent=0
    #allocation2 [shape = 'u8[512]{0}', space=smem, size = 0x200, scoped, tag = 'input window, operand 0, single buffered']
    #allocation3 [shape = 's32[1]{0}', space=sflag, size = 0x4, scoped, tag = 'scoped memory for beale_forward.1']
    #allocation4 [shape = 's32[1]{0}', space=sflag, size = 0x4, scoped, tag = 'scoped memory for beale_forward.1']
    #allocation5 [shape = 'u8[512]{0}', space=smem, size = 0x200, scoped, tag = 'output window, operand 0, single buffered']
    %6 = vsyncpa [#allocation3], 0
    %7 = vsyncpa [#allocation4], 0
    // Predicated region
    $region2: #{beale_forward.1} parent=1 // pred_check
      _
    $region3: #{beale_forward.1} parent=1 // pred_check_branch
      %9 = sbr.rel (0) target = $region5
    $region4: #{beale_forward.1} parent=1 // pred_region
      %s11 = ssub.s32 16, 16
      %12 = vsyncadd [#allocation3], %s11
      %15 = dma.hbm_to_smem %s0, 16, [#allocation2], [#allocation3]
    $region5: #{beale_forward.1} parent=1 // pred_fallthru
      _
    // Predicated region
    $region6: #{beale_forward.1} parent=1 // pred_check
      _
    $region7: #{beale_forward.1} parent=1 // pred_check_branch
      %17 = sbr.rel (0) target = $region9
    $region8: #{beale_forward.1} parent=1 // pred_region
      %18 = dma.done [#allocation3], 16
    $region9: #{beale_forward.1} parent=1 // pred_fallthru
      _
    %19 = sfence
    %s20 = sld [smem:[#allocation2]]
    %s21 = sld [smem:[#allocation2 + $0x1]]
    %s22 = smul.f32 %s20, %s21
    %s23 = smul.f32 %s22, %s21
    %s24 = ssub.f32 1.5, %s20
    %s25 = sadd.f32 %s24, %s22
    %s26 = ssub.f32 2.25, %s20
    %s27 = sadd.f32 %s26, %s23
    %s28 = ssub.f32 2.625, %s20
    %s29 = smul.f32 %s23, %s21
    %s30 = sadd.f32 %s28, %s29
    %s31 = smul.f32 %s25, %s25
    %s32 = smul.f32 %s27, %s27
    %s33 = sadd.f32 %s31, %s32
    %s34 = smul.f32 %s30, %s30
    %s35 = sadd.f32 %s33, %s34
    %s36 = scalar_lea.smem [#allocation5], 0
    %37 = sst [smem:[%s36]] %s35
    // Predicated region
    $region10: #{beale_forward.1} parent=1 // pred_check
      _
    $region11: #{beale_forward.1} parent=1 // pred_check_branch
      %39 = sbr.rel (0) target = $region13
    $region12: #{beale_forward.1} parent=1 // pred_region
      %s41 = ssub.s32 16, 16
      %42 = vsyncadd [#allocation4], %s41
      %45 = dma.smem_to_hbm [#allocation5], 16, %s1, [#allocation4]
    $region13: #{beale_forward.1} parent=1 // pred_fallthru
      _
    // Predicated region
    $region14: #{beale_forward.1} parent=1 // pred_check
      _
    $region15: #{beale_forward.1} parent=1 // pred_check_branch
      %47 = sbr.rel (0) target = $region17
    $region16: #{beale_forward.1} parent=1 // pred_region
      %48 = dma.done [#allocation4], 16
    $region17: #{beale_forward.1} parent=1 // pred_fallthru
      _
    %49 = sfence
    %50 = vsyncpa [#allocation3], 1
    %51 = vsyncpa [#allocation4], 1

</llo_original>
